<compile_context>
chip_gen: v6e
topology: v6e:2x2x1
jax: 0.10.0
libtpu: 0.0.40
codegen_flags: <defaults>
</compile_context>

<pallas_src>
import functools

import jax
import jax.numpy as jnp
from jax.experimental import pallas as pl
from jax.experimental.pallas import tpu as pltpu


def layernorm_kernel(x_ref, ab_ref, o_ref, *, eps, features):
    # x_ref: (block_rows, features); ab_ref: (2, features) f32 with
    # row 0 = a_2 (scale) and row 1 = b_2 (shift).
    x = x_ref[...].astype(jnp.float32)
    mean = jnp.mean(x, axis=-1, keepdims=True)
    diff = x - mean
    # torch.std default: unbiased (divide by N-1). `features` is static, so
    # 1/(features-1) folds to a trace-time constant. Two-pass (mean-then-diff)
    # form kept for numerical safety over the single-pass sum/sum-sq rewrite.
    var = jnp.sum(diff * diff, axis=-1, keepdims=True) * jnp.float32(1.0 / (features - 1))
    std = jnp.sqrt(var)
    # Exact per-row reciprocal of the (block_rows, 1) column: negligible cost
    # for a memory-bound kernel, and avoids the approx-EUP accuracy loss that
    # broke parity with the reference.
    inv = 1.0 / (std + jnp.float32(eps))
    a = ab_ref[0:1, :]
    b = ab_ref[1:2, :]
    o_ref[...] = ((diff * inv) * a + b).astype(o_ref.dtype)


def _choose_block_rows(rows, features, itemsize, packing):
    """Pick a large, sublane-packing-aligned row tile.

    Target ~4 MiB per block (in the HBM dtype): big enough to amortize the
    ~0.35 us per-grid-step overhead and sit on the HBM roofline on all of
    v5e/v6e/v7x, small enough that the double-buffered footprint (2x input +
    2x output buffers in the HBM dtype plus the in-kernel f32 temporaries)
    stays well below v7x's 64 MiB physical VMEM.
    """
    target_bytes = 4 * 1024 * 1024
    block_rows = max(packing, target_bytes // max(1, features * itemsize))
    block_rows = max(packing, (block_rows // packing) * packing)
    # No point making the block taller than the (packing-rounded) row count.
    rows_rounded = ((rows + packing - 1) // packing) * packing
    block_rows = min(block_rows, rows_rounded)
    block_rows = max(packing, (block_rows // packing) * packing)
    return block_rows


def layer_norm(x, a_2, b_2, eps=1e-6, block_rows=None):
    """Pallas TPU LayerNorm (unbiased std, eps outside sqrt), last-axis norm."""
    orig_shape = x.shape
    features = orig_shape[-1]
    # NOTE: features == 1 is degenerate for the unbiased estimator (N-1 == 0)
    # and yields NaN, exactly like torch.std in the reference module.
    rows = 1
    for d in orig_shape[:-1]:
        rows *= d

    x2 = x.reshape(rows, features)
    # Pack a_2 / b_2 into one pre-cast f32 operand: one DMA channel, no
    # per-grid-step casts inside the kernel.
    ab = jnp.concatenate(
        [a_2.reshape(1, features).astype(jnp.float32),
         b_2.reshape(1, features).astype(jnp.float32)],
        axis=0)

    itemsize = jnp.dtype(x.dtype).itemsize
    # Sublane packing: 8 rows for f32, 16 for bf16, 32 for int8/fp8.
    packing = 8 * max(1, 4 // itemsize)
    if block_rows is None:
        block_rows = _choose_block_rows(rows, features, itemsize, packing)
    assert block_rows % packing == 0, (
        f"block_rows={block_rows} must be a multiple of the sublane packing "
        f"({packing}) for dtype {x.dtype}")
    # NOTE: for best lane/store utilization, production `features` should be a
    # multiple of 128; smaller feature dims (like the 32 used in the test)
    # still run correctly but use masked stores.
    # TODO(synk): feature-axis chunking (two-pass / running moments) for very
    # wide feature dims whose minimal block + f32 temps exceed v7x's 64 MiB.

    grid = (pl.cdiv(rows, block_rows),)  # ragged last block handled by Pallas

    # VMEM budget with explicit f32-temporary accounting:
    #   2x input + 2x output double buffers (HBM dtype)
    #   + ~2 full-block f32 temporaries (x, diff) inside the kernel
    #   + the small (2, features) f32 scale/shift operand (double-buffered).
    # Capped at 48 MiB so the same sizing is safe on v7x's 64 MiB VMEM while
    # comfortably holding the ~4 MiB tiles on all generations.
    block_bytes = block_rows * features * itemsize
    needed = (4 * block_bytes
              + 2 * block_rows * features * 4
              + 2 * 2 * features * 4)
    vmem_limit = int(min(max(int(1.5 * needed), 32 * 1024 * 1024),
                         48 * 1024 * 1024))

    kernel = functools.partial(layernorm_kernel, eps=eps, features=features)

    out = pl.pallas_call(
        kernel,
        out_shape=jax.ShapeDtypeStruct((rows, features), x.dtype),
        grid_spec=pltpu.PrefetchScalarGridSpec(
            num_scalar_prefetch=0,
            grid=grid,
            in_specs=[
                pl.BlockSpec((block_rows, features), lambda i: (i, 0)),
                pl.BlockSpec((2, features), lambda i: (0, 0)),
            ],
            out_specs=pl.BlockSpec((block_rows, features), lambda i: (i, 0)),
        ),
        compiler_params=pltpu.CompilerParams(
            dimension_semantics=("parallel",),
            vmem_limit_bytes=vmem_limit,
        ),
    )(x2, ab)

    return out.reshape(orig_shape)


def layer_norm_ref(x, a_2, b_2, eps=1e-6):
    xf = x.astype(jnp.float32)
    mean = jnp.mean(xf, axis=-1, keepdims=True)
    diff = xf - mean
    n = x.shape[-1]
    std = jnp.sqrt(jnp.sum(diff * diff, axis=-1, keepdims=True) / (n - 1))
    return (a_2 * diff / (std + eps) + b_2).astype(x.dtype)


if __name__ == "__main__":
    key = jax.random.PRNGKey(0)
    k_x, k_a, k_b, k_x2 = jax.random.split(key, 4)

    batch, seq, hidden = 2, 8, 32  # features = hidden = 32
    x = jax.random.normal(k_x, (batch, seq, hidden), dtype=jnp.float32)

    # module __init__ uses ones / zeros; perturb deterministically to exercise
    # the scale/shift path while staying reproducible.
    a_2 = jnp.ones((hidden,), jnp.float32) + 0.1 * jax.random.normal(k_a, (hidden,))
    b_2 = jnp.zeros((hidden,), jnp.float32) + 0.1 * jax.random.normal(k_b, (hidden,))

    out = jax.block_until_ready(layer_norm(x, a_2, b_2, eps=1e-6))
    ref = layer_norm_ref(x, a_2, b_2, eps=1e-6)
    assert out.shape == x.shape
    assert jnp.allclose(out, ref, atol=1e-5, rtol=1e-5), "mismatch vs reference"

    # Row count not a multiple of the block -> exercises the pad-free cdiv grid.
    x_r = jax.random.normal(k_x2, (3, 5, hidden), dtype=jnp.float32)
    out_r = jax.block_until_ready(layer_norm(x_r, a_2, b_2, eps=1e-6))
    ref_r = layer_norm_ref(x_r, a_2, b_2, eps=1e-6)
    assert out_r.shape == x_r.shape
    assert jnp.allclose(out_r, ref_r, atol=1e-5, rtol=1e-5), "mismatch (ragged rows)"

    print("KERNEL_OK")
</pallas_src>

<mosaic_0001>
module attributes {stable_mosaic.version = 11 : i64} {
  func.func @layernorm_kernel(%arg0: i32, %arg1: memref<16x32xf32, #tpu.memory_space<vmem>>, %arg2: memref<2x32xf32, #tpu.memory_space<vmem>>, %arg3: memref<16x32xf32, #tpu.memory_space<vmem>>) attributes {dimension_semantics = [#tpu.dimension_semantics<parallel>], iteration_bounds = array<i64: 1>, scalar_prefetch = 0 : i64, scratch_operands = 0 : i64, tpu.core_type = #tpu.core_type<tc>, window_params = [{transform_indices = @transform_0, window_bounds = array<i64: 16, 32>}, {pipeline_mode = #tpu.pipeline_mode<synchronous>, transform_indices = @transform_1, window_bounds = array<i64: 2, 32>}, {transform_indices = @transform_2, window_bounds = array<i64: 16, 32>}]} {
    %c0 = arith.constant 0 : index
    %c0_0 = arith.constant 0 : index
    %0 = vector.load %arg1[%c0, %c0_0] : memref<16x32xf32, #tpu.memory_space<vmem>>, vector<16x32xf32>
    %cst = arith.constant dense<0.000000e+00> : vector<16xf32>
    %1 = vector.multi_reduction <add>, %0, %cst [1] : vector<16x32xf32> to vector<16xf32>
    %2 = vector.shape_cast %1 : vector<16xf32> to vector<16x1xf32>
    %cst_1 = arith.constant 3.200000e+01 : f32
    %3 = vector.broadcast %cst_1 : f32 to vector<16x1xf32>
    %4 = arith.divf %2, %3 : vector<16x1xf32>
    %5 = vector.broadcast %4 : vector<16x1xf32> to vector<16x32xf32>
    %6 = arith.subf %0, %5 : vector<16x32xf32>
    %7 = arith.mulf %6, %6 : vector<16x32xf32>
    %cst_2 = arith.constant dense<0.000000e+00> : vector<16xf32>
    %8 = vector.multi_reduction <add>, %7, %cst_2 [1] : vector<16x32xf32> to vector<16xf32>
    %9 = vector.shape_cast %8 : vector<16xf32> to vector<16x1xf32>
    %cst_3 = arith.constant 0.0322580636 : f32
    %10 = vector.broadcast %cst_3 : f32 to vector<16x1xf32>
    %11 = arith.mulf %9, %10 : vector<16x1xf32>
    %12 = math.sqrt %11 : vector<16x1xf32>
    %cst_4 = arith.constant 9.99999997E-7 : f32
    %13 = vector.broadcast %cst_4 : f32 to vector<16x1xf32>
    %14 = arith.addf %12, %13 : vector<16x1xf32>
    %cst_5 = arith.constant 1.000000e+00 : f32
    %15 = vector.broadcast %cst_5 : f32 to vector<16x1xf32>
    %16 = arith.divf %15, %14 : vector<16x1xf32>
    %c0_6 = arith.constant 0 : index
    %c0_7 = arith.constant 0 : index
    %17 = vector.load %arg2[%c0_6, %c0_7] : memref<2x32xf32, #tpu.memory_space<vmem>>, vector<1x32xf32>
    %c1 = arith.constant 1 : index
    %c0_8 = arith.constant 0 : index
    %18 = vector.load %arg2[%c1, %c0_8] : memref<2x32xf32, #tpu.memory_space<vmem>>, vector<1x32xf32>
    %19 = vector.broadcast %16 : vector<16x1xf32> to vector<16x32xf32>
    %20 = arith.mulf %6, %19 : vector<16x32xf32>
    %21 = vector.broadcast %17 : vector<1x32xf32> to vector<16x32xf32>
    %22 = arith.mulf %20, %21 : vector<16x32xf32>
    %23 = vector.broadcast %18 : vector<1x32xf32> to vector<16x32xf32>
    %24 = arith.addf %22, %23 : vector<16x32xf32>
    %c0_9 = arith.constant 0 : index
    %c0_10 = arith.constant 0 : index
    %25 = vector.load %arg3[%c0_9, %c0_10] : memref<16x32xf32, #tpu.memory_space<vmem>>, vector<16x32xf32>
    tpu.vector_store %arg3[%c0_9, %c0_10], %24 {strides = array<i32>} : memref<16x32xf32, #tpu.memory_space<vmem>>, vector<16x32xf32>,
    return
  }
  func.func @transform_0(%arg0: i32) -> (i32, i32) {
    %c0_i32 = arith.constant 0 : i32
    %c0_i32_0 = arith.constant 0 : i32
    return %arg0, %c0_i32 : i32, i32
  }
  func.func @transform_1(%arg0: i32) -> (i32, i32) {
    %c0_i32 = arith.constant 0 : i32
    %c0_i32_0 = arith.constant 0 : i32
    %c0_i32_1 = arith.constant 0 : i32
    return %c0_i32, %c0_i32_0 : i32, i32
  }
  func.func @transform_2(%arg0: i32) -> (i32, i32) {
    %c0_i32 = arith.constant 0 : i32
    %c0_i32_0 = arith.constant 0 : i32
    return %arg0, %c0_i32 : i32, i32
  }
}

</mosaic_0001>

<llo_original>
// kernel: tpu_custom_call.1
$region0: #{tpu_custom_call.1}
  #allocation0 [shape = 'u32[]', space=smem, size = 0x4, offset = 0x4, fixed_abs, tag = 'smem constant byte address 0x4 - core index']
  #allocation1 [shape = 'u32[144,128]{1,0:T(1,128)}', space=vmem, size = 0x12000, scoped, tag = 'internal scratch']
  %s0 = inlined_call_operand.hbm [shape: f32[16,32], index: 0, kind: input, shape index: {}]
  %s1 = inlined_call_operand.hbm [shape: f32[2,32], index: 1, kind: input, shape index: {}]
  %s2 = inlined_call_operand.hbm [shape: f32[16,32], index: 2, kind: output, shape index: {}]
  %s3 = sld [smem:[#allocation0]]
  $region26: #{tpu_custom_call.1} parent=0
    _
  %s5 = ssub.s32 1, %s3
  %s6 = scalar_select 0, %s5, %s3
  $region1: #{tpu_custom_call.1} parent=0
    #allocation2 [shape = 'u8[8192]{0}', space=vmem, size = 0x2000, scoped, tag = 'input window, operand 0, single buffered']
    #allocation3 [shape = 's32[1]{0}', space=sflag, size = 0x4, scoped, tag = 'scoped memory for tpu_custom_call.1']
    #allocation4 [shape = 's32[1]{0}', space=sflag, size = 0x4, scoped, tag = 'scoped memory for tpu_custom_call.1']
    #allocation5 [shape = 'u8[1024]{0}', space=vmem, size = 0x400, scoped, tag = 'input window, operand 1, single buffered']
    #allocation6 [shape = 's32[1]{0}', space=sflag, size = 0x4, scoped, tag = 'scoped memory for tpu_custom_call.1']
    #allocation7 [shape = 'u8[8192]{0}', space=vmem, size = 0x2000, scoped, tag = 'output window, operand 0, single buffered']
    %7 = vsyncpa [#allocation3], 0
    %8 = vsyncpa [#allocation6], 0
    %9 = vsyncpa [#allocation4], 0
    // Predicated region
    $region2: #{tpu_custom_call.1} parent=1 // pred_check
      _
    $region3: #{tpu_custom_call.1} parent=1 // pred_check_branch
      %11 = sbr.rel (0) target = $region5
    $region4: #{tpu_custom_call.1} parent=1 // pred_region
      %s13 = ssub.s32 256, 256
      %14 = vsyncadd [#allocation3], %s13
      %s15 = sshll.u32 [#allocation2], 4
      %s16 = int_to_ptr.vmem [resolvable:$true] %s15
      %21 = dma.hbm_to_vmem [thread:$0]  %s0, 256, %s16, [#allocation3], 128, 128, 8
    $region5: #{tpu_custom_call.1} parent=1 // pred_fallthru
      _
    // Predicated region
    $region6: #{tpu_custom_call.1} parent=1 // pred_check
      _
    $region7: #{tpu_custom_call.1} parent=1 // pred_check_branch
      %23 = sbr.rel (0) target = $region9
    $region8: #{tpu_custom_call.1} parent=1 // pred_region
      %s25 = ssub.s32 32, 32
      %26 = vsyncadd [#allocation6], %s25
      %s28 = sshll.u32 [#allocation5], 4
      %s29 = int_to_ptr.vmem [resolvable:$true] %s28
      %31 = dma.hbm_to_vmem [thread:$0]  %s1, 32, %s29, [#allocation6]
    $region9: #{tpu_custom_call.1} parent=1 // pred_fallthru
      _
    // Predicated region
    $region10: #{tpu_custom_call.1} parent=1 // pred_check
      _
    $region11: #{tpu_custom_call.1} parent=1 // pred_check_branch
      %33 = sbr.rel (0) target = $region13
    $region12: #{tpu_custom_call.1} parent=1 // pred_region
      %34 = dma.done [#allocation3], 256
    $region13: #{tpu_custom_call.1} parent=1 // pred_fallthru
      _
    // Predicated region
    $region14: #{tpu_custom_call.1} parent=1 // pred_check
      _
    $region15: #{tpu_custom_call.1} parent=1 // pred_check_branch
      %36 = sbr.rel (0) target = $region17
    $region16: #{tpu_custom_call.1} parent=1 // pred_region
      %37 = dma.done [#allocation6], 32
    $region17: #{tpu_custom_call.1} parent=1 // pred_fallthru
      _
    %v38 = vld [vmem:[#allocation2] sm:$0xff]
    %v39 = vld [vmem:[#allocation2 + $0x8] sm:$0xff]
    %vm40 = vcmask 261120
    %v41 = vsel %vm40, %v38, 0.0
    %42 = vadd.xlane.f32.xlu0 %v41
    %v43 = vpop.xlane.xlu0 %42
    %v44 = vsel %vm40, %v39, 0.0
    %45 = vadd.xlane.f32.xlu0 %v44
    %v46 = vpop.xlane.xlu0 %45
    %v47 = vrcp.pop 32.0
    %v48 = vmul.f32 %v43, %v47
    %v49 = vmul.f32 %v46, %v47
    %v50 = vsub.f32 %v38, %v48
    %v51 = vsub.f32 %v39, %v49
    %v52 = vmul.f32 %v50, %v50
    %v53 = vmul.f32 %v51, %v51
    %v54 = vsel %vm40, %v52, 0.0
    %55 = vadd.xlane.f32.xlu0 %v54
    %v56 = vpop.xlane.xlu0 %55
    %v57 = vsel %vm40, %v53, 0.0
    %58 = vadd.xlane.f32.xlu0 %v57
    %v59 = vpop.xlane.xlu0 %58
    %v60 = vmul.f32 %v56, 0.032258064
    %v61 = vmul.f32 %v59, 0.032258064
    %v62 = vrsqrt.pop %v60
    %v63 = vmul.f32 %v60, %v62
    %vm64 = vcmp.eq.f32.partialorder %v60, inf
    %v65 = vsel %vm64, %v60, %v63
    %vm66 = vcmp.eq.f32.partialorder %v60, 0.0
    %v67 = vand.u32 %v60, 2147483648
    %v68 = vsel %vm66, %v67, %v65
    %v69 = vrsqrt.pop %v61
    %v70 = vmul.f32 %v61, %v69
    %vm71 = vcmp.eq.f32.partialorder %v61, inf
    %v72 = vsel %vm71, %v61, %v70
    %vm73 = vcmp.eq.f32.partialorder %v61, 0.0
    %v74 = vand.u32 %v61, 2147483648
    %v75 = vsel %vm73, %v74, %v72
    %v76 = vadd.f32 %v68, 1e-06
    %v77 = vadd.f32 %v75, 1e-06
    %v78 = vrcp.pop %v76
    %v79 = vmul.f32 1.0, %v78
    %v80 = vrcp.pop %v77
    %v81 = vmul.f32 1.0, %v80
    %v82 = vld [vmem:[#allocation5] sm:$0x1]
    %v83 = vld [vmem:[#allocation5 + $0x1] sm:$0x1]
    %v84 = vmul.f32 %v50, %v79
    %v85 = vmul.f32 %v51, %v81
    %v86 = vlaneseq
    %v87 = vshrl.u32 %v86, 7
    %v88 = vsub.s32 0, %v87
    %v89 = vrot.slane %v82, %v88
    %v90 = vmul.f32 %v84, %v89
    %v91 = vmul.f32 %v85, %v89
    %v92 = vlaneseq
    %v93 = vshrl.u32 %v92, 7
    %v94 = vsub.s32 0, %v93
    %v95 = vrot.slane %v83, %v94
    %v96 = vadd.f32 %v90, %v95
    %v97 = vadd.f32 %v91, %v95
    %98 = vst.msk [vmem:[#allocation7] sm:$0xff] %vm40, %v96
    %99 = vst.msk [vmem:[#allocation7 + $0x8] sm:$0xff] %vm40, %v97
    // Predicated region
    $region18: #{tpu_custom_call.1} parent=1 // pred_check
      _
    $region19: #{tpu_custom_call.1} parent=1 // pred_check_branch
      %101 = sbr.rel (0) target = $region21
    $region20: #{tpu_custom_call.1} parent=1 // pred_region
      %s103 = ssub.s32 256, 256
      %104 = vsyncadd [#allocation4], %s103
      %s105 = sshll.u32 [#allocation7], 4
      %s106 = int_to_ptr.vmem [resolvable:$true] %s105
      %111 = dma.vmem_to_hbm [thread:$0]  %s106, 256, %s2, [#allocation4], 128, 128, 8
    $region21: #{tpu_custom_call.1} parent=1 // pred_fallthru
      _
    // Predicated region
    $region22: #{tpu_custom_call.1} parent=1 // pred_check
      _
    $region23: #{tpu_custom_call.1} parent=1 // pred_check_branch
      %113 = sbr.rel (0) target = $region25
    $region24: #{tpu_custom_call.1} parent=1 // pred_region
      %114 = dma.done [#allocation4], 256
    $region25: #{tpu_custom_call.1} parent=1 // pred_fallthru
      _
    %115 = vsyncpa [#allocation3], 1
    %116 = vsyncpa [#allocation6], 1
    %117 = vsyncpa [#allocation4], 1

</llo_original>
